<compile_context>
chip_gen: v7x
topology: tpu7x:2x2x1
jax: 0.10.0
libtpu: 0.0.40
codegen_flags: <defaults>
</compile_context>

<pallas_src>
import functools

import jax
import jax.numpy as jnp
from jax.experimental import pallas as pl
from jax.experimental.pallas import tpu as pltpu

# TODO(synk): the real discriminator's LeakyReLU slope is unknown; PyTorch's nn.LeakyReLU
# default (0.01) is used for the synthetic `md` stand-in here (HiFi-GAN style discs
# often use 0.1-0.2).
NEGATIVE_SLOPE = 0.01


# ----------------------------------------------------------------------------
# Fused Pallas kernel: dense stack (both discs, fake + real) + loss reductions
# ----------------------------------------------------------------------------
def _gen_loss_kernel(xf_ref, xr_ref, w1_ref, b1_ref, w2_ref, b2_ref, w3_ref, b3_ref,
                     o_ref, acc_adv_ref, acc_feat_ref, *, inv_adv, inv_feat, slope):
    t = pl.program_id(1)          # reduction axis (column tiles of T)

    @pl.when(t == 0)
    def _init():
        acc_adv_ref[...] = jnp.zeros_like(acc_adv_ref)
        acc_feat_ref[...] = jnp.zeros_like(acc_feat_ref)

    def lrelu(v):                 # f32 elementwise (VPU)
        return jnp.where(v > 0, v, slope * v)

    tm = xf_ref.shape[-1]

    # bf16 MXU operands; all accumulation / elementwise math stays f32.
    xf = xf_ref[...].astype(jnp.bfloat16)       # (C, tm)  fake tile (from y_hat)
    xr = xr_ref[...].astype(jnp.bfloat16)       # (C, tm)  real tile (from y)
    # Share layers 1-2 between the fake and real branches: one wide matmul each.
    x_cat = jnp.concatenate([xf, xr], axis=1)   # (C, 2*tm)

    w1 = w1_ref[...]; b1 = b1_ref[...]          # bf16 weights, f32 biases
    w2 = w2_ref[...]; b2 = b2_ref[...]
    w3 = w3_ref[...]; b3 = b3_ref[...]

    h1 = lrelu(jnp.dot(w1, x_cat, preferred_element_type=jnp.float32) + b1)      # (2H, 2tm) f32
    h2 = lrelu(jnp.dot(w2, h1.astype(jnp.bfloat16),
                       preferred_element_type=jnp.float32) + b2)                 # (2H, 2tm) f32
    # Only the fake branch needs the final layer (x_real[-1] is never used by the loss).
    h3f = jnp.dot(w3, h2[:, :tm].astype(jnp.bfloat16),
                  preferred_element_type=jnp.float32) + b3                        # (2O, tm) f32

    # Vector accumulation (pure VPU, co-issues with MXU pushes); no per-step reductions.
    d = 1.0 - h3f
    acc_adv_ref[...] = acc_adv_ref[...] + d * d
    feat = jnp.abs(h1[:, :tm] - h1[:, tm:]) + jnp.abs(h2[:, :tm] - h2[:, tm:])
    acc_feat_ref[...] = acc_feat_ref[...] + feat

    @pl.when(t == pl.num_programs(1) - 1)
    def _finalize():
        total = (jnp.sum(acc_adv_ref[...]) * inv_adv
                 + jnp.sum(acc_feat_ref[...]) * inv_feat)
        # Lane-dense (8, 128) per-batch partial; wrapper sums element [0, 0] over B.
        o_ref[...] = jnp.full(o_ref.shape, total, jnp.float32)


def _block_diag(blocks):
    rows = sum(b.shape[0] for b in blocks)
    cols = sum(b.shape[1] for b in blocks)
    out = jnp.zeros((rows, cols), blocks[0].dtype)
    r = c = 0
    for b in blocks:
        out = out.at[r:r + b.shape[0], c:c + b.shape[1]].set(b)
        r += b.shape[0]
        c += b.shape[1]
    return out


def generator_loss(params, y, y_hat, *, negative_slope=NEGATIVE_SLOPE):
    """y, y_hat: (B, C, T).  params: per-discriminator list of 3 (w, b) layers."""
    B, C, T = y.shape
    num_disc = len(params)
    assert all(len(p) == 3 for p in params), "synthetic md uses 3 layers per disc"
    H = params[0][0][0].shape[1]
    O = params[0][-1][0].shape[1]
    DH = num_disc * H
    DO = num_disc * O

    # Pack both discriminators into one weight set (block-diagonal for layers 2/3).
    # Weights are pre-cast to bf16 (MXU-native); biases stay f32.
    # TODO(synk): in a training loop these packed/cast weights would be precomputed once.
    w1_t = jnp.concatenate([p[0][0].T for p in params], axis=0).astype(jnp.bfloat16)  # (DH, C)
    b1 = jnp.concatenate([p[0][1] for p in params]).reshape(DH, 1).astype(jnp.float32)
    w2_t = _block_diag([p[1][0].T for p in params]).astype(jnp.bfloat16)              # (DH, DH)
    b2 = jnp.concatenate([p[1][1] for p in params]).reshape(DH, 1).astype(jnp.float32)
    w3_t = _block_diag([p[2][0].T for p in params]).astype(jnp.bfloat16)              # (DO, DH)
    b3 = jnp.concatenate([p[2][1] for p in params]).reshape(DO, 1).astype(jnp.float32)

    # Column tile over T (the native lane axis) — biggest divisor up to 8192 to keep
    # per-step pipeline overhead negligible; fall back to whole-T for short inputs.
    tm = T
    for cand in (8192, 4096, 2048, 1024, 512, 256, 128):
        if T % cand == 0:
            tm = cand
            break

    grid = (B, T // tm)

    kernel = functools.partial(
        _gen_loss_kernel,
        inv_adv=1.0 / float(B * T * O),    # sum over discs of per-disc means
        inv_feat=1.0 / float(B * T * H),   # sum over discs & feature layers of means
        slope=float(negative_slope),
    )

    out = pl.pallas_call(
        kernel,
        out_shape=jax.ShapeDtypeStruct((B, 8, 128), jnp.float32),
        grid_spec=pltpu.PrefetchScalarGridSpec(
            num_scalar_prefetch=0,
            grid=grid,
            in_specs=[
                pl.BlockSpec((None, C, tm), lambda b, t: (b, 0, t)),   # fake tile (y_hat)
                pl.BlockSpec((None, C, tm), lambda b, t: (b, 0, t)),   # real tile (y)
                pl.BlockSpec((DH, C), lambda b, t: (0, 0)),            # w1^T (packed, bf16)
                pl.BlockSpec((DH, 1), lambda b, t: (0, 0)),            # b1
                pl.BlockSpec((DH, DH), lambda b, t: (0, 0)),           # w2^T (block-diag, bf16)
                pl.BlockSpec((DH, 1), lambda b, t: (0, 0)),            # b2
                pl.BlockSpec((DO, DH), lambda b, t: (0, 0)),           # w3^T (block-diag, bf16)
                pl.BlockSpec((DO, 1), lambda b, t: (0, 0)),            # b3
            ],
            out_specs=pl.BlockSpec((None, 8, 128), lambda b, t: (b, 0, 0)),
            scratch_shapes=[
                pltpu.VMEM((DO, tm), jnp.float32),   # adversarial-term accumulator
                pltpu.VMEM((DH, tm), jnp.float32),   # feature-matching accumulator
            ],
        ),
        compiler_params=pltpu.CompilerParams(
            # batch axis parallel (v7x: shards across both TensorCores), T tiles are the
            # carried reduction -> arbitrary and innermost.
            dimension_semantics=("parallel", "arbitrary"),
            vmem_limit_bytes=48 * 1024 * 1024,
        ),
    )(y_hat, y, w1_t, b1, w2_t, b2, w3_t, b3)

    # Per-batch partials -> final scalar (tiny XLA reduction).
    return jnp.sum(out[:, 0, 0])


# ----------------------------------------------------------------------------
# Synthetic multi-discriminator `md` parameters (deterministic)
# ----------------------------------------------------------------------------
def make_md_params(num_disc=2, in_ch=8, hidden=32, out_ch=8, seed=0):
    key = jax.random.PRNGKey(seed)
    params = []
    for _ in range(num_disc):
        dims = [in_ch, hidden, hidden, out_ch]
        layers = []
        for li in range(len(dims) - 1):
            key, kw, kb = jax.random.split(key, 3)
            w = 0.1 * jax.random.normal(kw, (dims[li], dims[li + 1]), jnp.float32)
            b = 0.01 * jax.random.normal(kb, (dims[li + 1],), jnp.float32)
            layers.append((w, b))
        params.append(layers)
    return params


# ----------------------------------------------------------------------------
# Pure-JAX reference (same math as the PyTorch module, f32 throughout, no Pallas)
# ----------------------------------------------------------------------------
def generator_loss_ref(params, y, y_hat, *, negative_slope=NEGATIVE_SLOPE):
    def md_forward(x):
        B, C, T = x.shape
        x2d = jnp.transpose(x, (0, 2, 1)).reshape(B * T, C)
        outs = []
        for layers in params:
            feats = []
            h = x2d
            for li, (w, b) in enumerate(layers):
                h = h @ w + b[None, :]
                if li < len(layers) - 1:
                    h = jnp.where(h > 0, h, negative_slope * h)
                feats.append(h)
            outs.append(feats)
        return outs

    d_fake = md_forward(y_hat)
    d_real = md_forward(y)
    loss_g = sum(jnp.mean((1.0 - xf[-1]) ** 2) for xf in d_fake)
    loss_feature = jnp.float32(0.0)
    for i in range(len(d_fake)):
        for j in range(len(d_fake[i]) - 1):
            loss_feature = loss_feature + jnp.mean(jnp.abs(d_fake[i][j] - d_real[i][j]))
    return jnp.float32(loss_g + loss_feature)


if __name__ == "__main__":
    B, C, T = 2, 8, 64  # small NCT "audio-feature" input
    key = jax.random.PRNGKey(0)
    ky, kyh = jax.random.split(key)
    y = jax.random.normal(ky, (B, C, T), jnp.float32)
    y_hat = jax.random.normal(kyh, (B, C, T), jnp.float32)

    params = make_md_params(num_disc=2, in_ch=C, hidden=32, out_ch=8, seed=0)

    loss = jax.block_until_ready(generator_loss(params, y, y_hat))
    loss_ref = jax.block_until_ready(generator_loss_ref(params, y, y_hat))
    # Looser tolerance: the kernel uses bf16 MXU operands (f32 accumulation); the
    # reference is pure f32.
    assert jnp.allclose(loss, loss_ref, rtol=2e-2, atol=2e-2), (loss, loss_ref)

    print("KERNEL_OK")
</pallas_src>

<mosaic_0001>
module attributes {stable_mosaic.version = 11 : i64} {
  func.func @_gen_loss_kernel(%arg0: i32, %arg1: i32, %arg2: memref<1x8x64xf32, #tpu.memory_space<vmem>>, %arg3: memref<1x8x64xf32, #tpu.memory_space<vmem>>, %arg4: memref<64x8xbf16, #tpu.memory_space<vmem>>, %arg5: memref<64x1xf32, #tpu.memory_space<vmem>>, %arg6: memref<64x64xbf16, #tpu.memory_space<vmem>>, %arg7: memref<64x1xf32, #tpu.memory_space<vmem>>, %arg8: memref<16x64xbf16, #tpu.memory_space<vmem>>, %arg9: memref<16x1xf32, #tpu.memory_space<vmem>>, %arg10: memref<1x8x128xf32, #tpu.memory_space<vmem>>, %arg11: memref<16x64xf32, #tpu.memory_space<vmem>>, %arg12: memref<64x64xf32, #tpu.memory_space<vmem>>) attributes {dimension_semantics = [#tpu.dimension_semantics<parallel>, #tpu.dimension_semantics<arbitrary>], iteration_bounds = array<i64: 2, 1>, scalar_prefetch = 0 : i64, scratch_operands = 2 : i64, tpu.core_type = #tpu.core_type<tc>, window_params = [{transform_indices = @transform_0, window_bounds = array<i64: 1, 8, 64>}, {transform_indices = @transform_1, window_bounds = array<i64: 1, 8, 64>}, {pipeline_mode = #tpu.pipeline_mode<synchronous>, transform_indices = @transform_2, window_bounds = array<i64: 64, 8>}, {pipeline_mode = #tpu.pipeline_mode<synchronous>, transform_indices = @transform_3, window_bounds = array<i64: 64, 1>}, {pipeline_mode = #tpu.pipeline_mode<synchronous>, transform_indices = @transform_4, window_bounds = array<i64: 64, 64>}, {pipeline_mode = #tpu.pipeline_mode<synchronous>, transform_indices = @transform_5, window_bounds = array<i64: 64, 1>}, {pipeline_mode = #tpu.pipeline_mode<synchronous>, transform_indices = @transform_6, window_bounds = array<i64: 16, 64>}, {pipeline_mode = #tpu.pipeline_mode<synchronous>, transform_indices = @transform_7, window_bounds = array<i64: 16, 1>}, {transform_indices = @transform_8, window_bounds = array<i64: 1, 8, 128>}]} {
    %c0_i32 = arith.constant 0 : i32
    %0 = arith.cmpi eq, %arg1, %c0_i32 : i32
    %1 = arith.extui %0 : i1 to i32
    %c0_i32_0 = arith.constant 0 : i32
    %2 = arith.cmpi ne, %1, %c0_i32_0 : i32
    scf.if %2 {
      %cst_35 = arith.constant 0.000000e+00 : f32
      %59 = vector.broadcast %cst_35 : f32 to vector<16x64xf32>
      %c0_36 = arith.constant 0 : index
      %c0_37 = arith.constant 0 : index
      %60 = vector.load %arg11[%c0_36, %c0_37] : memref<16x64xf32, #tpu.memory_space<vmem>>, vector<16x64xf32>
      tpu.vector_store %arg11[%c0_36, %c0_37], %59 {strides = array<i32>} : memref<16x64xf32, #tpu.memory_space<vmem>>, vector<16x64xf32>,
      %cst_38 = arith.constant 0.000000e+00 : f32
      %61 = vector.broadcast %cst_38 : f32 to vector<64x64xf32>
      %c0_39 = arith.constant 0 : index
      %c0_40 = arith.constant 0 : index
      %62 = vector.load %arg12[%c0_39, %c0_40] : memref<64x64xf32, #tpu.memory_space<vmem>>, vector<64x64xf32>
      tpu.vector_store %arg12[%c0_39, %c0_40], %61 {strides = array<i32>} : memref<64x64xf32, #tpu.memory_space<vmem>>, vector<64x64xf32>,
    } else {
    }
    %c0 = arith.constant 0 : index
    %c0_1 = arith.constant 0 : index
    %c0_2 = arith.constant 0 : index
    %3 = vector.load %arg2[%c0, %c0_1, %c0_2] : memref<1x8x64xf32, #tpu.memory_space<vmem>>, vector<1x8x64xf32>
    %4 = vector.shape_cast %3 : vector<1x8x64xf32> to vector<8x64xf32>
    %5 = arith.truncf %4 : vector<8x64xf32> to vector<8x64xbf16>
    %c0_3 = arith.constant 0 : index
    %c0_4 = arith.constant 0 : index
    %c0_5 = arith.constant 0 : index
    %6 = vector.load %arg3[%c0_3, %c0_4, %c0_5] : memref<1x8x64xf32, #tpu.memory_space<vmem>>, vector<1x8x64xf32>
    %7 = vector.shape_cast %6 : vector<1x8x64xf32> to vector<8x64xf32>
    %8 = arith.truncf %7 : vector<8x64xf32> to vector<8x64xbf16>
    %9 = tpu.concatenate %5, %8 in 1 : vector<8x64xbf16>, vector<8x64xbf16> -> vector<8x128xbf16>
    %c0_6 = arith.constant 0 : index
    %c0_7 = arith.constant 0 : index
    %10 = vector.load %arg4[%c0_6, %c0_7] : memref<64x8xbf16, #tpu.memory_space<vmem>>, vector<64x8xbf16>
    %c0_8 = arith.constant 0 : index
    %c0_9 = arith.constant 0 : index
    %11 = vector.load %arg5[%c0_8, %c0_9] : memref<64x1xf32, #tpu.memory_space<vmem>>, vector<64x1xf32>
    %c0_10 = arith.constant 0 : index
    %c0_11 = arith.constant 0 : index
    %12 = vector.load %arg6[%c0_10, %c0_11] : memref<64x64xbf16, #tpu.memory_space<vmem>>, vector<64x64xbf16>
    %c0_12 = arith.constant 0 : index
    %c0_13 = arith.constant 0 : index
    %13 = vector.load %arg7[%c0_12, %c0_13] : memref<64x1xf32, #tpu.memory_space<vmem>>, vector<64x1xf32>
    %c0_14 = arith.constant 0 : index
    %c0_15 = arith.constant 0 : index
    %14 = vector.load %arg8[%c0_14, %c0_15] : memref<16x64xbf16, #tpu.memory_space<vmem>>, vector<16x64xbf16>
    %c0_16 = arith.constant 0 : index
    %c0_17 = arith.constant 0 : index
    %15 = vector.load %arg9[%c0_16, %c0_17] : memref<16x1xf32, #tpu.memory_space<vmem>>, vector<16x1xf32>
    %cst = arith.constant dense<0.000000e+00> : vector<64x128xf32>
    %16 = tpu.matmul %10, %9, %cst {dimension_numbers = #tpu.dot_dimension_numbers<[1], [0], [0], [1], [0, 0, 1, 1], [], []>} : vector<64x8xbf16>, vector<8x128xbf16>, vector<64x128xf32> -> vector<64x128xf32>
    %17 = vector.broadcast %11 : vector<64x1xf32> to vector<64x128xf32>
    %18 = arith.addf %16, %17 : vector<64x128xf32>
    %cst_18 = arith.constant 0.000000e+00 : f32
    %19 = vector.broadcast %cst_18 : f32 to vector<64x128xf32>
    %20 = arith.cmpf ogt, %18, %19 : vector<64x128xf32>
    %cst_19 = arith.constant 0.00999999977 : f32
    %21 = vector.broadcast %cst_19 : f32 to vector<64x128xf32>
    %22 = arith.mulf %21, %18 : vector<64x128xf32>
    %23 = arith.select %20, %18, %22 : vector<64x128xi1>, vector<64x128xf32>
    %24 = arith.truncf %23 : vector<64x128xf32> to vector<64x128xbf16>
    %cst_20 = arith.constant dense<0.000000e+00> : vector<64x128xf32>
    %25 = tpu.matmul %12, %24, %cst_20 {dimension_numbers = #tpu.dot_dimension_numbers<[1], [0], [0], [1], [0, 0, 1, 1], [], []>} : vector<64x64xbf16>, vector<64x128xbf16>, vector<64x128xf32> -> vector<64x128xf32>
    %26 = vector.broadcast %13 : vector<64x1xf32> to vector<64x128xf32>
    %27 = arith.addf %25, %26 : vector<64x128xf32>
    %cst_21 = arith.constant 0.000000e+00 : f32
    %28 = vector.broadcast %cst_21 : f32 to vector<64x128xf32>
    %29 = arith.cmpf ogt, %27, %28 : vector<64x128xf32>
    %cst_22 = arith.constant 0.00999999977 : f32
    %30 = vector.broadcast %cst_22 : f32 to vector<64x128xf32>
    %31 = arith.mulf %30, %27 : vector<64x128xf32>
    %32 = arith.select %29, %27, %31 : vector<64x128xi1>, vector<64x128xf32>
    %33 = vector.extract_strided_slice %32 {offsets = [0, 0], sizes = [64, 64], strides = [1, 1]} : vector<64x128xf32> to vector<64x64xf32>
    %34 = arith.truncf %33 : vector<64x64xf32> to vector<64x64xbf16>
    %cst_23 = arith.constant dense<0.000000e+00> : vector<16x64xf32>
    %35 = tpu.matmul %14, %34, %cst_23 {dimension_numbers = #tpu.dot_dimension_numbers<[1], [0], [0], [1], [0, 0, 1, 1], [], []>} : vector<16x64xbf16>, vector<64x64xbf16>, vector<16x64xf32> -> vector<16x64xf32>
    %36 = vector.broadcast %15 : vector<16x1xf32> to vector<16x64xf32>
    %37 = arith.addf %35, %36 : vector<16x64xf32>
    %cst_24 = arith.constant 1.000000e+00 : f32
    %38 = vector.broadcast %cst_24 : f32 to vector<16x64xf32>
    %39 = arith.subf %38, %37 : vector<16x64xf32>
    %c0_25 = arith.constant 0 : index
    %c0_26 = arith.constant 0 : index
    %40 = vector.load %arg11[%c0_25, %c0_26] : memref<16x64xf32, #tpu.memory_space<vmem>>, vector<16x64xf32>
    %41 = arith.mulf %39, %39 : vector<16x64xf32>
    %42 = arith.addf %40, %41 : vector<16x64xf32>
    %c0_27 = arith.constant 0 : index
    %c0_28 = arith.constant 0 : index
    %43 = vector.load %arg11[%c0_27, %c0_28] : memref<16x64xf32, #tpu.memory_space<vmem>>, vector<16x64xf32>
    tpu.vector_store %arg11[%c0_27, %c0_28], %42 {strides = array<i32>} : memref<16x64xf32, #tpu.memory_space<vmem>>, vector<16x64xf32>,
    %44 = vector.extract_strided_slice %23 {offsets = [0, 0], sizes = [64, 64], strides = [1, 1]} : vector<64x128xf32> to vector<64x64xf32>
    %45 = vector.extract_strided_slice %23 {offsets = [0, 64], sizes = [64, 64], strides = [1, 1]} : vector<64x128xf32> to vector<64x64xf32>
    %46 = arith.subf %44, %45 : vector<64x64xf32>
    %47 = math.absf %46 : vector<64x64xf32>
    %48 = vector.extract_strided_slice %32 {offsets = [0, 0], sizes = [64, 64], strides = [1, 1]} : vector<64x128xf32> to vector<64x64xf32>
    %49 = vector.extract_strided_slice %32 {offsets = [0, 64], sizes = [64, 64], strides = [1, 1]} : vector<64x128xf32> to vector<64x64xf32>
    %50 = arith.subf %48, %49 : vector<64x64xf32>
    %51 = math.absf %50 : vector<64x64xf32>
    %52 = arith.addf %47, %51 : vector<64x64xf32>
    %c0_29 = arith.constant 0 : index
    %c0_30 = arith.constant 0 : index
    %53 = vector.load %arg12[%c0_29, %c0_30] : memref<64x64xf32, #tpu.memory_space<vmem>>, vector<64x64xf32>
    %54 = arith.addf %53, %52 : vector<64x64xf32>
    %c0_31 = arith.constant 0 : index
    %c0_32 = arith.constant 0 : index
    %55 = vector.load %arg12[%c0_31, %c0_32] : memref<64x64xf32, #tpu.memory_space<vmem>>, vector<64x64xf32>
    tpu.vector_store %arg12[%c0_31, %c0_32], %54 {strides = array<i32>} : memref<64x64xf32, #tpu.memory_space<vmem>>, vector<64x64xf32>,
    %c0_i32_33 = arith.constant 0 : i32
    %56 = arith.cmpi eq, %arg1, %c0_i32_33 : i32
    %57 = arith.extui %56 : i1 to i32
    %c0_i32_34 = arith.constant 0 : i32
    %58 = arith.cmpi ne, %57, %c0_i32_34 : i32
    scf.if %58 {
      %c0_35 = arith.constant 0 : index
      %c0_36 = arith.constant 0 : index
      %59 = vector.load %arg11[%c0_35, %c0_36] : memref<16x64xf32, #tpu.memory_space<vmem>>, vector<16x64xf32>
      %60 = vector.shape_cast %59 : vector<16x64xf32> to vector<1x16x64xf32>
      %cst_37 = arith.constant dense<0.000000e+00> : vector<1xf32>
      %61 = vector.multi_reduction <add>, %60, %cst_37 [1, 2] : vector<1x16x64xf32> to vector<1xf32>
      %62 = vector.shape_cast %61 : vector<1xf32> to vector<1x1x1xf32>
      %63 = vector.extract %62[0, 0, 0] : f32 from vector<1x1x1xf32>
      %cst_38 = arith.constant 9.765625E-4 : f32
      %64 = arith.mulf %63, %cst_38 : f32
      %c0_39 = arith.constant 0 : index
      %c0_40 = arith.constant 0 : index
      %65 = vector.load %arg12[%c0_39, %c0_40] : memref<64x64xf32, #tpu.memory_space<vmem>>, vector<64x64xf32>
      %66 = vector.shape_cast %65 : vector<64x64xf32> to vector<1x64x64xf32>
      %cst_41 = arith.constant dense<0.000000e+00> : vector<1xf32>
      %67 = vector.multi_reduction <add>, %66, %cst_41 [1, 2] : vector<1x64x64xf32> to vector<1xf32>
      %68 = vector.shape_cast %67 : vector<1xf32> to vector<1x1x1xf32>
      %69 = vector.extract %68[0, 0, 0] : f32 from vector<1x1x1xf32>
      %cst_42 = arith.constant 2.44140625E-4 : f32
      %70 = arith.mulf %69, %cst_42 : f32
      %71 = arith.addf %64, %70 : f32
      %72 = vector.broadcast %71 : f32 to vector<8x128xf32>
      %c0_43 = arith.constant 0 : index
      %c0_44 = arith.constant 0 : index
      %c0_45 = arith.constant 0 : index
      %73 = vector.load %arg10[%c0_43, %c0_44, %c0_45] : memref<1x8x128xf32, #tpu.memory_space<vmem>>, vector<1x8x128xf32>
      %74 = vector.shape_cast %73 : vector<1x8x128xf32> to vector<8x128xf32>
      %75 = vector.shape_cast %72 : vector<8x128xf32> to vector<1x8x128xf32>
      tpu.vector_store %arg10[%c0_43, %c0_44, %c0_45], %75 {strides = array<i32>} : memref<1x8x128xf32, #tpu.memory_space<vmem>>, vector<1x8x128xf32>,
    } else {
    }
    return
  }
  func.func @transform_0(%arg0: i32, %arg1: i32) -> (i32, i32, i32) {
    %c0_i32 = arith.constant 0 : i32
    %c0_i32_0 = arith.constant 0 : i32
    return %arg0, %c0_i32, %arg1 : i32, i32, i32
  }
  func.func @transform_1(%arg0: i32, %arg1: i32) -> (i32, i32, i32) {
    %c0_i32 = arith.constant 0 : i32
    %c0_i32_0 = arith.constant 0 : i32
    return %arg0, %c0_i32, %arg1 : i32, i32, i32
  }
  func.func @transform_2(%arg0: i32, %arg1: i32) -> (i32, i32) {
    %c0_i32 = arith.constant 0 : i32
    %c0_i32_0 = arith.constant 0 : i32
    %c0_i32_1 = arith.constant 0 : i32
    return %c0_i32, %c0_i32_0 : i32, i32
  }
  func.func @transform_3(%arg0: i32, %arg1: i32) -> (i32, i32) {
    %c0_i32 = arith.constant 0 : i32
    %c0_i32_0 = arith.constant 0 : i32
    %c0_i32_1 = arith.constant 0 : i32
    return %c0_i32, %c0_i32_0 : i32, i32
  }
  func.func @transform_4(%arg0: i32, %arg1: i32) -> (i32, i32) {
    %c0_i32 = arith.constant 0 : i32
    %c0_i32_0 = arith.constant 0 : i32
    %c0_i32_1 = arith.constant 0 : i32
    return %c0_i32, %c0_i32_0 : i32, i32
  }
  func.func @transform_5(%arg0: i32, %arg1: i32) -> (i32, i32) {
    %c0_i32 = arith.constant 0 : i32
    %c0_i32_0 = arith.constant 0 : i32
    %c0_i32_1 = arith.constant 0 : i32
    return %c0_i32, %c0_i32_0 : i32, i32
  }
  func.func @transform_6(%arg0: i32, %arg1: i32) -> (i32, i32) {
    %c0_i32 = arith.constant 0 : i32
    %c0_i32_0 = arith.constant 0 : i32
    %c0_i32_1 = arith.constant 0 : i32
    return %c0_i32, %c0_i32_0 : i32, i32
  }
  func.func @transform_7(%arg0: i32, %arg1: i32) -> (i32, i32) {
    %c0_i32 = arith.constant 0 : i32
    %c0_i32_0 = arith.constant 0 : i32
    %c0_i32_1 = arith.constant 0 : i32
    return %c0_i32, %c0_i32_0 : i32, i32
  }
  func.func @transform_8(%arg0: i32, %arg1: i32) -> (i32, i32, i32) {
    %c0_i32 = arith.constant 0 : i32
    %c0_i32_0 = arith.constant 0 : i32
    %c0_i32_1 = arith.constant 0 : i32
    return %arg0, %c0_i32, %c0_i32_0 : i32, i32, i32
  }
}

</mosaic_0001>

<llo_original>
// kernel: tpu_custom_call.1
$region0: #{tpu_custom_call.1}
  #allocation0 [shape = 'u32[]', space=smem, size = 0x4, offset = 0x4, fixed_abs, tag = 'smem constant byte address 0x4 - core index']
  #allocation1 [shape = 'u32[144,128]{1,0:T(1,128)}', space=vmem, size = 0x12000, scoped, tag = 'internal scratch']
  #allocation2 [shape = 'f32[16,64]{1,0:T(8,128)}', space=vmem, size = 0x2000, scoped, tag = 'scratch operand']
  #allocation3 [shape = 'f32[64,64]{1,0:T(8,128)}', space=vmem, size = 0x8000, scoped, tag = 'scratch operand']
  %s0 = inlined_call_operand.vmem [shape: f32[2,8,64], index: 0, kind: input, shape index: {}]
  %s1 = inlined_call_operand.vmem [shape: f32[2,8,64], index: 1, kind: input, shape index: {}]
  %s2 = inlined_call_operand.vmem [shape: bf16[64,8], index: 2, kind: input, shape index: {}]
  %s3 = inlined_call_operand.vmem [shape: f32[64,1], index: 3, kind: input, shape index: {}]
  %s4 = inlined_call_operand.vmem [shape: bf16[64,64], index: 4, kind: input, shape index: {}]
  %s5 = inlined_call_operand.vmem [shape: f32[64,1], index: 5, kind: input, shape index: {}]
  %s6 = inlined_call_operand.vmem [shape: bf16[16,64], index: 6, kind: input, shape index: {}]
  %s7 = inlined_call_operand.vmem [shape: f32[16,1], index: 7, kind: input, shape index: {}]
  %s8 = inlined_call_operand.hbm [shape: f32[2,8,128], index: 8, kind: output, shape index: {}]
  %s9 = sld [smem:[#allocation0]]
  $region73: #{tpu_custom_call.1} parent=0
    _
  %s11 = ssub.s32 1, %s9
  %s12 = scalar_select 0, %s11, %s9
  $region1: #{tpu_custom_call.1} parent=0
    #allocation4 [shape = 'u8[8192]{0}', space=vmem, size = 0x2000, scoped, tag = 'output window, operand 0']
    #allocation5 [shape = 's32[2]{0}', space=sflag, size = 0x8, scoped, tag = 'scoped memory for tpu_custom_call.1']
    %13 = vsyncpa [#allocation5], 0
    %s14 = scalar_lea.sflag [#allocation5], 1
    %15 = vsyncpa %s14, 0
    loop: start=0, step=1, limit=4
    $region2: #{tpu_custom_call.1} parent=1 // loop_pre_header
      _
    $region3: #{tpu_custom_call.1} parent=1 // loop_header
      %s17 = sphi 0, %s21
      %p18 = scmp.ge.s32.totalorder %s17, 4
      %s24 = sphi 0, %s36
      %s25 = sphi 0, %s32
      %s26 = sphi 0, %s24
      %s27 = sphi 0, %s25
      %s28 = sphi 0, %s26
      %s29 = sphi 0, %s27
      %s41 = sphi 0, %s43
      %s44 = sphi 0, %s41
      %s45 = sphi 0, %s44
      %s61 = sphi 0, %s45
      %s69 = sphi 0, %s71
      %s72 = sphi 0, %s69
      %s73 = sphi 0, %s72
      %s89 = sphi 0, %s73
      %s93 = sphi 0, %s93
      %s95 = sphi 0, %s93
      %s96 = sphi 0, %s95
      %s110 = sphi 0, %s96
      %s114 = sphi 0, %s114
      %s116 = sphi 0, %s114
      %s117 = sphi 0, %s116
      %s131 = sphi 0, %s117
      %s135 = sphi 0, %s135
      %s137 = sphi 0, %s135
      %s138 = sphi 0, %s137
      %s152 = sphi 0, %s138
      %s156 = sphi 0, %s156
      %s158 = sphi 0, %s156
      %s159 = sphi 0, %s158
      %s173 = sphi 0, %s159
      %s177 = sphi 0, %s177
      %s179 = sphi 0, %s177
      %s180 = sphi 0, %s179
      %s194 = sphi 0, %s180
      %s198 = sphi 0, %s198
      %s200 = sphi 0, %s198
      %s201 = sphi 0, %s200
      %s215 = sphi 0, %s201
      %s221 = sphi 0, %s223
      %s224 = sphi 0, %s221
      %s225 = sphi 0, %s224
      %s241 = sphi 0, %s225
    $region4: #{tpu_custom_call.1} parent=1 // loop_header_branch
      %20 = sbr.rel (%p18) target = $region8
    $region5: #{tpu_custom_call.1} parent=1 // loop_body
      %s22 = ssub.s32 %s17, 1
      %s23 = ssub.s32 %s17, 2
      %s30 = sadd.s32 1, %s25
      %p31 = scmp.ge.s32.totalorder %s30, 1
      %s32 = scalar_select %p31, 0, %s30
      %s33 = sadd.s32 1, %s24
      %s34 = scalar_select %p31, %s33, %s24
      %p35 = scmp.ge.s32.totalorder %s34, 2
      %s36 = scalar_select %p35, 0, %s34
      %s37 = ssub.s32 %s24, %s36
      %s38 = ssub.s32 %s25, %s32
      %s39 = sor.u32 %s37, %s38
      %p40 = scmp.eq.s32.totalorder %s39, 0
      %s42 = sadd.s32 %s41, 1
      %s43 = scalar_select %p40, %s41, %s42
      %p46 = pneg %p40
      %p47 = scmp.eq.s32.totalorder %s17, 1
      %p48 = por %p46, %p47
      %p49 = scmp.ne.s32.totalorder %s41, %s44
      %p50 = scmp.eq.s32.totalorder %s17, 0
      %p51 = por %p49, %p50
      %p52 = scmp.ne.s32.totalorder %s41, %s44
      %p53 = scmp.eq.s32.totalorder %s22, 1
      %p54 = por %p52, %p53
      %p55 = scmp.ne.s32.totalorder %s44, %s45
      %p56 = scmp.eq.s32.totalorder %s22, 0
      %p57 = por %p55, %p56
      %p58 = scmp.ne.s32.totalorder %s44, %s45
      %p59 = scmp.eq.s32.totalorder %s23, 1
      %p60 = por %p58, %p59
      %p62 = scmp.ne.s32.totalorder %s45, %s61
      %p63 = scmp.eq.s32.totalorder %s23, 0
      %p64 = por %p62, %p63
      %s65 = ssub.s32 %s24, %s36
      %s66 = ssub.s32 %s25, %s32
      %s67 = sor.u32 %s65, %s66
      %p68 = scmp.eq.s32.totalorder %s67, 0
      %s70 = sadd.s32 %s69, 1
      %s71 = scalar_select %p68, %s69, %s70
      %p74 = pneg %p68
      %p75 = scmp.eq.s32.totalorder %s17, 1
      %p76 = por %p74, %p75
      %p77 = scmp.ne.s32.totalorder %s69, %s72
      %p78 = scmp.eq.s32.totalorder %s17, 0
      %p79 = por %p77, %p78
      %p80 = scmp.ne.s32.totalorder %s69, %s72
      %p81 = scmp.eq.s32.totalorder %s22, 1
      %p82 = por %p80, %p81
      %p83 = scmp.ne.s32.totalorder %s72, %s73
      %p84 = scmp.eq.s32.totalorder %s22, 0
      %p85 = por %p83, %p84
      %p86 = scmp.ne.s32.totalorder %s72, %s73
      %p87 = scmp.eq.s32.totalorder %s23, 1
      %p88 = por %p86, %p87
      %p90 = scmp.ne.s32.totalorder %s73, %s89
      %p91 = scmp.eq.s32.totalorder %s23, 0
      %p92 = por %p90, %p91
      %s94 = sadd.s32 %s93, 1
      %p97 = scmp.eq.s32.totalorder %s17, 1
      %p98 = scmp.ne.s32.totalorder %s93, %s95
      %p99 = scmp.eq.s32.totalorder %s17, 0
      %p100 = por %p98, %p99
      %p101 = scmp.ne.s32.totalorder %s93, %s95
      %p102 = scmp.eq.s32.totalorder %s22, 1
      %p103 = por %p101, %p102
      %p104 = scmp.ne.s32.totalorder %s95, %s96
      %p105 = scmp.eq.s32.totalorder %s22, 0
      %p106 = por %p104, %p105
      %p107 = scmp.ne.s32.totalorder %s95, %s96
      %p108 = scmp.eq.s32.totalorder %s23, 1
      %p109 = por %p107, %p108
      %p111 = scmp.ne.s32.totalorder %s96, %s110
      %p112 = scmp.eq.s32.totalorder %s23, 0
      %p113 = por %p111, %p112
      %s115 = sadd.s32 %s114, 1
      %p118 = scmp.eq.s32.totalorder %s17, 1
      %p119 = scmp.ne.s32.totalorder %s114, %s116
      %p120 = scmp.eq.s32.totalorder %s17, 0
      %p121 = por %p119, %p120
      %p122 = scmp.ne.s32.totalorder %s114, %s116
      %p123 = scmp.eq.s32.totalorder %s22, 1
      %p124 = por %p122, %p123
      %p125 = scmp.ne.s32.totalorder %s116, %s117
      %p126 = scmp.eq.s32.totalorder %s22, 0
      %p127 = por %p125, %p126
      %p128 = scmp.ne.s32.totalorder %s116, %s117
      %p129 = scmp.eq.s32.totalorder %s23, 1
      %p130 = por %p128, %p129
      %p132 = scmp.ne.s32.totalorder %s117, %s131
      %p133 = scmp.eq.s32.totalorder %s23, 0
      %p134 = por %p132, %p133
      %s136 = sadd.s32 %s135, 1
      %p139 = scmp.eq.s32.totalorder %s17, 1
      %p140 = scmp.ne.s32.totalorder %s135, %s137
      %p141 = scmp.eq.s32.totalorder %s17, 0
      %p142 = por %p140, %p141
      %p143 = scmp.ne.s32.totalorder %s135, %s137
      %p144 = scmp.eq.s32.totalorder %s22, 1
      %p145 = por %p143, %p144
      %p146 = scmp.ne.s32.totalorder %s137, %s138
      %p147 = scmp.eq.s32.totalorder %s22, 0
      %p148 = por %p146, %p147
      %p149 = scmp.ne.s32.totalorder %s137, %s138
      %p150 = scmp.eq.s32.totalorder %s23, 1
      %p151 = por %p149, %p150
      %p153 = scmp.ne.s32.totalorder %s138, %s152
      %p154 = scmp.eq.s32.totalorder %s23, 0
      %p155 = por %p153, %p154
      %s157 = sadd.s32 %s156, 1
      %p160 = scmp.eq.s32.totalorder %s17, 1
      %p161 = scmp.ne.s32.totalorder %s156, %s158
      %p162 = scmp.eq.s32.totalorder %s17, 0
      %p163 = por %p161, %p162
      %p164 = scmp.ne.s32.totalorder %s156, %s158
      %p165 = scmp.eq.s32.totalorder %s22, 1
      %p166 = por %p164, %p165
      %p167 = scmp.ne.s32.totalorder %s158, %s159
      %p168 = scmp.eq.s32.totalorder %s22, 0
      %p169 = por %p167, %p168
      %p170 = scmp.ne.s32.totalorder %s158, %s159
      %p171 = scmp.eq.s32.totalorder %s23, 1
      %p172 = por %p170, %p171
      %p174 = scmp.ne.s32.totalorder %s159, %s173
      %p175 = scmp.eq.s32.totalorder %s23, 0
      %p176 = por %p174, %p175
      %s178 = sadd.s32 %s177, 1
      %p181 = scmp.eq.s32.totalorder %s17, 1
      %p182 = scmp.ne.s32.totalorder %s177, %s179
      %p183 = scmp.eq.s32.totalorder %s17, 0
      %p184 = por %p182, %p183
      %p185 = scmp.ne.s32.totalorder %s177, %s179
      %p186 = scmp.eq.s32.totalorder %s22, 1
      %p187 = por %p185, %p186
      %p188 = scmp.ne.s32.totalorder %s179, %s180
      %p189 = scmp.eq.s32.totalorder %s22, 0
      %p190 = por %p188, %p189
      %p191 = scmp.ne.s32.totalorder %s179, %s180
      %p192 = scmp.eq.s32.totalorder %s23, 1
      %p193 = por %p191, %p192
      %p195 = scmp.ne.s32.totalorder %s180, %s194
      %p196 = scmp.eq.s32.totalorder %s23, 0
      %p197 = por %p195, %p196
      %s199 = sadd.s32 %s198, 1
      %p202 = scmp.eq.s32.totalorder %s17, 1
      %p203 = scmp.ne.s32.totalorder %s198, %s200
      %p204 = scmp.eq.s32.totalorder %s17, 0
      %p205 = por %p203, %p204
      %p206 = scmp.ne.s32.totalorder %s198, %s200
      %p207 = scmp.eq.s32.totalorder %s22, 1
      %p208 = por %p206, %p207
      %p209 = scmp.ne.s32.totalorder %s200, %s201
      %p210 = scmp.eq.s32.totalorder %s22, 0
      %p211 = por %p209, %p210
      %p212 = scmp.ne.s32.totalorder %s200, %s201
      %p213 = scmp.eq.s32.totalorder %s23, 1
      %p214 = por %p212, %p213
      %p216 = scmp.ne.s32.totalorder %s201, %s215
      %p217 = scmp.eq.s32.totalorder %s23, 0
      %p218 = por %p216, %p217
      %s219 = ssub.s32 %s24, %s36
      %p220 = scmp.eq.s32.totalorder %s219, 0
      %s222 = sadd.s32 %s221, 1
      %s223 = scalar_select %p220, %s221, %s222
      %p226 = pneg %p220
      %p227 = scmp.eq.s32.totalorder %s17, 1
      %p228 = por %p226, %p227
      %p229 = scmp.ne.s32.totalorder %s221, %s224
      %p230 = scmp.eq.s32.totalorder %s17, 0
      %p231 = por %p229, %p230
      %p232 = scmp.ne.s32.totalorder %s221, %s224
      %p233 = scmp.eq.s32.totalorder %s22, 1
      %p234 = por %p232, %p233
      %p235 = scmp.ne.s32.totalorder %s224, %s225
      %p236 = scmp.eq.s32.totalorder %s22, 0
      %p237 = por %p235, %p236
      %p238 = scmp.ne.s32.totalorder %s224, %s225
      %p239 = scmp.eq.s32.totalorder %s23, 1
      %p240 = por %p238, %p239
      %p242 = scmp.ne.s32.totalorder %s225, %s241
      %p243 = scmp.eq.s32.totalorder %s23, 0
      %p244 = por %p242, %p243
      %p245 = scmp.le.s32.totalorder 1, %s17
      %p246 = scmp.lt.s32.totalorder %s17, 3
      %p247 = pnand %p245, %p246
      %p248 = pneg %p247
      // Predicated region
      $region9: #{tpu_custom_call.1} parent=5 // pred_check
        _
      $region10: #{tpu_custom_call.1} parent=5 // pred_check_branch
        %250 = sbr.rel (%p247) target = $region12
      $region11: #{tpu_custom_call.1} parent=5 // pred_region
        %s251 = ssub.s32 %s17, 1
        // Predicated region
        $region13: #{tpu_custom_call.1} parent=11 // pred_check
          %p252 = pneg %p106
        $region14: #{tpu_custom_call.1} parent=11 // pred_check_branch
          %254 = sbr.rel (%p252) target = $region16
        $region15: #{tpu_custom_call.1} parent=11 // pred_region
          _
        $region16: #{tpu_custom_call.1} parent=11 // pred_fallthru
          _
        // Predicated region
        $region17: #{tpu_custom_call.1} parent=11 // pred_check
          %p255 = pneg %p127
        $region18: #{tpu_custom_call.1} parent=11 // pred_check_branch
          %257 = sbr.rel (%p255) target = $region20
        $region19: #{tpu_custom_call.1} parent=11 // pred_region
          _
        $region20: #{tpu_custom_call.1} parent=11 // pred_fallthru
          _
        // Predicated region
        $region21: #{tpu_custom_call.1} parent=11 // pred_check
          %p258 = pneg %p148
        $region22: #{tpu_custom_call.1} parent=11 // pred_check_branch
          %260 = sbr.rel (%p258) target = $region24
        $region23: #{tpu_custom_call.1} parent=11 // pred_region
          _
        $region24: #{tpu_custom_call.1} parent=11 // pred_fallthru
          _
        // Predicated region
        $region25: #{tpu_custom_call.1} parent=11 // pred_check
          %p261 = pneg %p169
        $region26: #{tpu_custom_call.1} parent=11 // pred_check_branch
          %263 = sbr.rel (%p261) target = $region28
        $region27: #{tpu_custom_call.1} parent=11 // pred_region
          _
        $region28: #{tpu_custom_call.1} parent=11 // pred_fallthru
          _
        // Predicated region
        $region29: #{tpu_custom_call.1} parent=11 // pred_check
          %p264 = pneg %p190
        $region30: #{tpu_custom_call.1} parent=11 // pred_check_branch
          %266 = sbr.rel (%p264) target = $region32
        $region31: #{tpu_custom_call.1} parent=11 // pred_region
          _
        $region32: #{tpu_custom_call.1} parent=11 // pred_fallthru
          _
        // Predicated region
        $region33: #{tpu_custom_call.1} parent=11 // pred_check
          %p267 = pneg %p211
        $region34: #{tpu_custom_call.1} parent=11 // pred_check_branch
          %269 = sbr.rel (%p267) target = $region36
        $region35: #{tpu_custom_call.1} parent=11 // pred_region
          _
        $region36: #{tpu_custom_call.1} parent=11 // pred_fallthru
          _
      $region12: #{tpu_custom_call.1} parent=5 // pred_fallthru
        _
      %p270 = scmp.lt.s32.totalorder %s17, 2
      // Predicated region
      $region37: #{tpu_custom_call.1} parent=5 // pred_check
        %p271 = pneg %p270
      $region38: #{tpu_custom_call.1} parent=5 // pred_check_branch
        %273 = sbr.rel (%p271) target = $region40
      $region39: #{tpu_custom_call.1} parent=5 // pred_region
        // Predicated region
        $region41: #{tpu_custom_call.1} parent=39 // pred_check
          %p274 = pneg %p51
        $region42: #{tpu_custom_call.1} parent=39 // pred_check_branch
          %276 = sbr.rel (%p274) target = $region44
        $region43: #{tpu_custom_call.1} parent=39 // pred_region
          %p277 = scmp.lt.s32.totalorder %s24, 1
          %s278 = scalar_select %p277, %s24, 1
          %p279 = scmp.lt.s32.totalorder %s25, 0
          %s280 = scalar_select %p279, %s25, 0
          %s281 = sadd.s32 %s280, %s278
          %s282 = smul.addr %s281, 8
          %s283 = scalar_lea.vmem %s0, %s282
        $region44: #{tpu_custom_call.1} parent=39 // pred_fallthru
          _
        // Predicated region
        $region45: #{tpu_custom_call.1} parent=39 // pred_check
          %p284 = pneg %p79
        $region46: #{tpu_custom_call.1} parent=39 // pred_check_branch
          %286 = sbr.rel (%p284) target = $region48
        $region47: #{tpu_custom_call.1} parent=39 // pred_region
          %p287 = scmp.lt.s32.totalorder %s24, 1
          %s288 = scalar_select %p287, %s24, 1
          %p289 = scmp.lt.s32.totalorder %s25, 0
          %s290 = scalar_select %p289, %s25, 0
          %s291 = sadd.s32 %s290, %s288
          %s292 = smul.addr %s291, 8
          %s293 = scalar_lea.vmem %s1, %s292
        $region48: #{tpu_custom_call.1} parent=39 // pred_fallthru
          _
      $region40: #{tpu_custom_call.1} parent=5 // pred_fallthru
        _
      %p294 = scmp.le.s32.totalorder 1, %s17
      %p295 = scmp.lt.s32.totalorder %s17, 3
      %p296 = pnand %p294, %p295
      %p297 = pneg %p296
      // Predicated region
      $region49: #{tpu_custom_call.1} parent=5 // pred_check
        _
      $region50: #{tpu_custom_call.1} parent=5 // pred_check_branch
        %299 = sbr.rel (%p296) target = $region52
      $region51: #{tpu_custom_call.1} parent=5 // pred_region
        %s300 = ssub.s32 %s17, 1
        %p301 = scmp.lt.s32.totalorder %s26, 1
        %s302 = scalar_select %p301, %s26, 1
        %p303 = scmp.lt.s32.totalorder %s27, 0
        %s304 = scalar_select %p303, %s27, 0
        %s305 = sadd.s32 %s304, %s302
        %s306 = smul.addr %s305, 8
        %s307 = scalar_lea.vmem %s0, %s306
        %p308 = pneg %p57
        %p309 = pneg %p54
        %p310 = scmp.lt.s32.totalorder %s26, 1
        %s311 = scalar_select %p310, %s26, 1
        %p312 = scmp.lt.s32.totalorder %s27, 0
        %s313 = scalar_select %p312, %s27, 0
        %s314 = sadd.s32 %s313, %s311
        %s315 = smul.addr %s314, 8
        %s316 = scalar_lea.vmem %s1, %s315
        %p317 = pneg %p85
        %p318 = pneg %p82
        %p319 = pneg %p106
        %p320 = pneg %p103
        %p321 = pneg %p127
        %p322 = pneg %p124
        %p323 = pneg %p148
        %p324 = pneg %p145
        %p325 = pneg %p169
        %p326 = pneg %p166
        %p327 = pneg %p190
        %p328 = pneg %p187
        %p329 = pneg %p211
        %p330 = pneg %p208
        %p331 = pneg %p237
        %p332 = pneg %p234
        %s333 = sand.u32 %s224, 1
        %s334 = scalar_lea.sflag [#allocation5], %s333
        %s335 = sand.u32 %s224, 1
        %s336 = smul.addr %s335, 8
        %s337 = scalar_lea.vmem [#allocation4], %s336
        %p338 = scmp.lt.s32.totalorder %s26, 1
        %s339 = scalar_select %p338, %s26, 1
        %p340 = scmp.lt.s32.totalorder %s27, 0
        %s341 = scalar_select %p340, %s27, 0
        %s342 = sadd.s32 %s341, %s339
        %s343 = smul.addr %s342, 8
        %s344 = scalar_lea.vmem %s0, %s343
        %p345 = scmp.lt.s32.totalorder %s26, 1
        %s346 = scalar_select %p345, %s26, 1
        %p347 = scmp.lt.s32.totalorder %s27, 0
        %s348 = scalar_select %p347, %s27, 0
        %s349 = sadd.s32 %s348, %s346
        %s350 = smul.addr %s349, 8
        %s351 = scalar_lea.vmem %s1, %s350
        %p353 = scmp.eq.s32.totalorder %s27, 0
        // Predicated region
        $region53: #{tpu_custom_call.1} parent=51 // pred_check
          %p354 = pneg %p353
        $region54: #{tpu_custom_call.1} parent=51 // pred_check_branch
          %356 = sbr.rel (%p354) target = $region56
        $region55: #{tpu_custom_call.1} parent=51 // pred_region
          %vm357 = vcmask 523264
          %358 = vst.msk [vmem:[#allocation2] sm:$0xff] %vm357, 0.0
          %359 = vst.msk [vmem:[#allocation2 + $0x8] sm:$0xff] %vm357, 0.0
          %360 = vst.msk [vmem:[#allocation3] sm:$0xff] %vm357, 0.0
          %361 = vst.msk [vmem:[#allocation3 + $0x8] sm:$0xff] %vm357, 0.0
          %362 = vst.msk [vmem:[#allocation3 + $0x10] sm:$0xff] %vm357, 0.0
          %363 = vst.msk [vmem:[#allocation3 + $0x18] sm:$0xff] %vm357, 0.0
          %364 = vst.msk [vmem:[#allocation3 + $0x20] sm:$0xff] %vm357, 0.0
          %365 = vst.msk [vmem:[#allocation3 + $0x28] sm:$0xff] %vm357, 0.0
          %366 = vst.msk [vmem:[#allocation3 + $0x30] sm:$0xff] %vm357, 0.0
          %367 = vst.msk [vmem:[#allocation3 + $0x38] sm:$0xff] %vm357, 0.0
        $region56: #{tpu_custom_call.1} parent=51 // pred_fallthru
          _
        %v368 = vld [vmem:[%s344] sm:$0xff]
        %v369 = vpack.c.bf16 %v368, %v368
        %v370 = vld [vmem:[%s351] sm:$0xff]
        %v371 = vpack.c.bf16 %v370, %v370
        %373 = vrot.lane.b32.xlu0 %v371, 64
        %v374 = vpop.permute.xlu0 %373
        %vm375 = vcmask 523264
        %v378 = vsel %vm375, %v369, %v374
        %v379 = vld [vmem:[%s2] sm:$0xf]
        %v380 = vld [vmem:[%s2 + $0x4] sm:$0xf]
        %v381 = vld [vmem:[%s2 + $0x8] sm:$0xf]
        %v382 = vld [vmem:[%s2 + $0xc] sm:$0xf]
        %v383 = vld [vmem:[%s2 + $0x10] sm:$0xf]
        %v384 = vld [vmem:[%s2 + $0x14] sm:$0xf]
        %v385 = vld [vmem:[%s2 + $0x18] sm:$0xf]
        %v386 = vld [vmem:[%s2 + $0x1c] sm:$0xf]
        %v387 = vld [vmem:[%s3] sm:$0xff]
        %v388 = vld [vmem:[%s3 + $0x8] sm:$0xff]
        %v389 = vld [vmem:[%s3 + $0x10] sm:$0xff]
        %v390 = vld [vmem:[%s3 + $0x18] sm:$0xff]
        %v391 = vld [vmem:[%s3 + $0x20] sm:$0xff]
        %v392 = vld [vmem:[%s3 + $0x28] sm:$0xff]
        %v393 = vld [vmem:[%s3 + $0x30] sm:$0xff]
        %v394 = vld [vmem:[%s3 + $0x38] sm:$0xff]
        %v395 = vld [vmem:[%s4] sm:$0xf]
        %v396 = vld [vmem:[%s4 + $0x4] sm:$0xf]
        %v397 = vld [vmem:[%s4 + $0x8] sm:$0xf]
        %v398 = vld [vmem:[%s4 + $0xc] sm:$0xf]
        %v399 = vld [vmem:[%s4 + $0x10] sm:$0xf]
        %v400 = vld [vmem:[%s4 + $0x14] sm:$0xf]
        %v401 = vld [vmem:[%s4 + $0x18] sm:$0xf]
        %v402 = vld [vmem:[%s4 + $0x1c] sm:$0xf]
        %v403 = vld [vmem:[%s5] sm:$0xff]
        %v404 = vld [vmem:[%s5 + $0x8] sm:$0xff]
        %v405 = vld [vmem:[%s5 + $0x10] sm:$0xff]
        %v406 = vld [vmem:[%s5 + $0x18] sm:$0xff]
        %v407 = vld [vmem:[%s5 + $0x20] sm:$0xff]
        %v408 = vld [vmem:[%s5 + $0x28] sm:$0xff]
        %v409 = vld [vmem:[%s5 + $0x30] sm:$0xff]
        %v410 = vld [vmem:[%s5 + $0x38] sm:$0xff]
        %v411 = vld [vmem:[%s6] sm:$0xf]
        %v412 = vld [vmem:[%s6 + $0x4] sm:$0xf]
        %v413 = vld [vmem:[%s7] sm:$0xff]
        %v414 = vld [vmem:[%s7 + $0x8] sm:$0xff]
        %416 = vset.pattern.permute.xlu0 0
        %417 = vperm.xlu0 %416, %v387
        %v418 = vpop.permute.xlu0 %417
        %421 = vset.pattern.permute.xlu0 0
        %422 = vperm.xlu0 %421, %v388
        %v423 = vpop.permute.xlu0 %422
        %426 = vset.pattern.permute.xlu0 0
        %427 = vperm.xlu0 %426, %v389
        %v428 = vpop.permute.xlu0 %427
        %431 = vset.pattern.permute.xlu0 0
        %432 = vperm.xlu0 %431, %v390
        %v433 = vpop.permute.xlu0 %432
        %436 = vset.pattern.permute.xlu0 0
        %437 = vperm.xlu0 %436, %v391
        %v438 = vpop.permute.xlu0 %437
        %441 = vset.pattern.permute.xlu0 0
        %442 = vperm.xlu0 %441, %v392
        %v443 = vpop.permute.xlu0 %442
        %446 = vset.pattern.permute.xlu0 0
        %447 = vperm.xlu0 %446, %v393
        %v448 = vpop.permute.xlu0 %447
        %451 = vset.pattern.permute.xlu0 0
        %452 = vperm.xlu0 %451, %v394
        %v453 = vpop.permute.xlu0 %452
        %v463 = vunpack.c.l.b16 %v379
        %v464 = vunpack.c.l.b16 %v380
        %v465 = vunpack.c.l.b16 %v381
        %v466 = vunpack.c.l.b16 %v382
        %v467 = vunpack.c.l.b16 %v383
        %v468 = vunpack.c.l.b16 %v384
        %v469 = vunpack.c.l.b16 %v385
        %v470 = vunpack.c.l.b16 %v386
        %v471 = vpack.c.b16 %v464, %v463
        %v472 = vpack.c.b16 %v466, %v465
        %v473 = vpack.c.b16 %v468, %v467
        %v474 = vpack.c.b16 %v470, %v469
        %vm475 = vcmask 64512
        %v477 = vsel %vm475, %v471, 0
        %v480 = vsel %vm475, %v472, 0
        %v483 = vsel %vm475, %v473, 0
        %v486 = vsel %vm475, %v474, 0
        %vm488 = vcmask 1043456
        %v489 = vsel %vm488, %v378, 0
        %491 = vmatprep.subr.bf16.mxu0 0
        %492 = vmatpush1.bf16.msra.mxu0 %v489
        %493 = vmatprep.subr.bf16.mxu0 0
        %494 = vmatpush1.bf16.msra.mxu0 0
        %495 = vmatprep.subr.bf16.mxu0 0
        %496 = vmatpush1.bf16.msra.mxu0 0
        %497 = vmatprep.subr.bf16.mxu0 0
        %498 = vmatpush1.bf16.msra.mxu0 0
        %499 = vmatprep.subr.bf16.mxu0 0
        %500 = vmatpush1.bf16.msra.mxu0 0
        %501 = vmatprep.subr.bf16.mxu0 0
        %502 = vmatpush1.bf16.msra.mxu0 0
        %503 = vmatprep.subr.bf16.mxu0 0
        %504 = vmatpush1.bf16.msra.mxu0 0
        %505 = vmatprep.subr.bf16.mxu0 0
        %506 = vmatpush1.bf16.msra.mxu0 0
        %507 = vmatprep.subr.bf16.mxu0 0
        %508 = vmatpush1.bf16.msra.mxu0 0
        %509 = vmatprep.subr.bf16.mxu0 0
        %510 = vmatpush1.bf16.msra.mxu0 0
        %511 = vmatprep.subr.bf16.mxu0 0
        %512 = vmatpush1.bf16.msra.mxu0 0
        %513 = vmatprep.subr.bf16.mxu0 0
        %514 = vmatpush1.bf16.msra.mxu0 0
        %515 = vmatprep.subr.bf16.mxu0 0
        %516 = vmatpush1.bf16.msra.mxu0 0
        %517 = vmatprep.subr.bf16.mxu0 0
        %518 = vmatpush1.bf16.msra.mxu0 0
        %519 = vmatprep.subr.bf16.mxu0 0
        %520 = vmatpush1.bf16.msra.mxu0 0
        %521 = vmatprep.subr.bf16.mxu0 0
        %522 = vmatpush1.bf16.msra.mxu0 0
        %523 = vmatprep.mubr.bf16.mxu0 0
        %524 = vmatmul.mubr.bf16.gmra.mrb[0].mxu0 %v477
        %v525 = vpop.f32.mrb[0].mxu0
        %v526 = vadd.f32 %v418, %v525
        %v527 = vpop.f32.mrb[0].mxu0
        %v528 = vpop.f32.mrb[0].mxu0
        %v529 = vadd.f32 %v423, %v528
        %v530 = vpop.f32.mrb[0].mxu0
        %531 = vmatprep.mubr.bf16.mxu0 0
        %532 = vmatmul.mubr.bf16.gmra.mrb[0].mxu0 %v480
        %v533 = vpop.f32.mrb[0].mxu0
        %v534 = vadd.f32 %v428, %v533
        %v535 = vpop.f32.mrb[0].mxu0
        %v536 = vpop.f32.mrb[0].mxu0
        %v537 = vadd.f32 %v433, %v536
        %v538 = vpop.f32.mrb[0].mxu0
        %539 = vmatprep.mubr.bf16.mxu0 0
        %540 = vmatmul.mubr.bf16.gmra.mrb[0].mxu0 %v483
        %v541 = vpop.f32.mrb[0].mxu0
        %v542 = vadd.f32 %v438, %v541
        %v543 = vpop.f32.mrb[0].mxu0
        %v544 = vpop.f32.mrb[0].mxu0
        %v545 = vadd.f32 %v443, %v544
        %v546 = vpop.f32.mrb[0].mxu0
        %547 = vmatprep.mubr.bf16.mxu0 0
        %548 = vmatmul.mubr.bf16.gmra.mrb[0].mxu0 %v486
        %v549 = vpop.f32.mrb[0].mxu0
        %v550 = vadd.f32 %v448, %v549
        %v551 = vpop.f32.mrb[0].mxu0
        %v552 = vpop.f32.mrb[0].mxu0
        %v553 = vadd.f32 %v453, %v552
        %v554 = vpop.f32.mrb[0].mxu0
        %555 = vdwg.mxu0
        %vm556 = vcmp.gt.f32.partialorder %v526, 0.0
        %vm557 = vcmp.gt.f32.partialorder %v529, 0.0
        %vm558 = vcmp.gt.f32.partialorder %v534, 0.0
        %vm559 = vcmp.gt.f32.partialorder %v537, 0.0
        %vm560 = vcmp.gt.f32.partialorder %v542, 0.0
        %vm561 = vcmp.gt.f32.partialorder %v545, 0.0
        %vm562 = vcmp.gt.f32.partialorder %v550, 0.0
        %vm563 = vcmp.gt.f32.partialorder %v553, 0.0
        %v564 = vmul.f32 %v526, 0.01
        %v565 = vmul.f32 %v529, 0.01
        %v566 = vmul.f32 %v534, 0.01
        %v567 = vmul.f32 %v537, 0.01
        %v568 = vmul.f32 %v542, 0.01
        %v569 = vmul.f32 %v545, 0.01
        %v570 = vmul.f32 %v550, 0.01
        %v571 = vmul.f32 %v553, 0.01
        %v572 = vsel %vm556, %v526, %v564
        %v573 = vsel %vm557, %v529, %v565
        %v574 = vsel %vm558, %v534, %v566
        %v575 = vsel %vm559, %v537, %v567
        %v576 = vsel %vm560, %v542, %v568
        %v577 = vsel %vm561, %v545, %v569
        %v578 = vsel %vm562, %v550, %v570
        %v579 = vsel %vm563, %v553, %v571
        %v580 = vpack.c.bf16 %v573, %v572
        %v581 = vpack.c.bf16 %v575, %v574
        %v582 = vpack.c.bf16 %v577, %v576
        %v583 = vpack.c.bf16 %v579, %v578
        %585 = vset.pattern.permute.xlu0 0
        %586 = vperm.xlu0 %585, %v403
        %v587 = vpop.permute.xlu0 %586
        %590 = vset.pattern.permute.xlu0 0
        %591 = vperm.xlu0 %590, %v404
        %v592 = vpop.permute.xlu0 %591
        %595 = vset.pattern.permute.xlu0 0
        %596 = vperm.xlu0 %595, %v405
        %v597 = vpop.permute.xlu0 %596
        %600 = vset.pattern.permute.xlu0 0
        %601 = vperm.xlu0 %600, %v406
        %v602 = vpop.permute.xlu0 %601
        %605 = vset.pattern.permute.xlu0 0
        %606 = vperm.xlu0 %605, %v407
        %v607 = vpop.permute.xlu0 %606
        %610 = vset.pattern.permute.xlu0 0
        %611 = vperm.xlu0 %610, %v408
        %v612 = vpop.permute.xlu0 %611
        %615 = vset.pattern.permute.xlu0 0
        %616 = vperm.xlu0 %615, %v409
        %v617 = vpop.permute.xlu0 %616
        %620 = vset.pattern.permute.xlu0 0
        %621 = vperm.xlu0 %620, %v410
        %v622 = vpop.permute.xlu0 %621
        %v632 = vunpack.c.l.b16 %v395
        %v633 = vunpack.c.l.b16 %v396
        %v634 = vunpack.c.l.b16 %v397
        %v635 = vunpack.c.l.b16 %v398
        %v636 = vunpack.c.l.b16 %v399
        %v637 = vunpack.c.l.b16 %v400
        %v638 = vunpack.c.l.b16 %v401
        %v639 = vunpack.c.l.b16 %v402
        %v640 = vpack.c.b16 %v633, %v632
        %v641 = vpack.c.b16 %v635, %v634
        %v642 = vpack.c.b16 %v637, %v636
        %v643 = vpack.c.b16 %v639, %v638
        %v645 = vsel %vm375, %v640, 0
        %v648 = vsel %vm375, %v641, 0
        %v651 = vsel %vm375, %v642, 0
        %v654 = vsel %vm375, %v643, 0
        %656 = vmatprep.subr.bf16.mxu0 0
        %657 = vmatpush1.bf16.msra.mxu0 %v580
        %658 = vmatprep.subr.bf16.mxu0 0
        %659 = vmatpush1.bf16.msra.mxu0 %v581
        %660 = vmatprep.subr.bf16.mxu0 0
        %661 = vmatpush1.bf16.msra.mxu0 %v582
        %662 = vmatprep.subr.bf16.mxu0 0
        %663 = vmatpush1.bf16.msra.mxu0 %v583
        %664 = vmatprep.subr.bf16.mxu0 0
        %665 = vmatpush1.bf16.msra.mxu0 0
        %666 = vmatprep.subr.bf16.mxu0 0
        %667 = vmatpush1.bf16.msra.mxu0 0
        %668 = vmatprep.subr.bf16.mxu0 0
        %669 = vmatpush1.bf16.msra.mxu0 0
        %670 = vmatprep.subr.bf16.mxu0 0
        %671 = vmatpush1.bf16.msra.mxu0 0
        %672 = vmatprep.subr.bf16.mxu0 0
        %673 = vmatpush1.bf16.msra.mxu0 0
        %674 = vmatprep.subr.bf16.mxu0 0
        %675 = vmatpush1.bf16.msra.mxu0 0
        %676 = vmatprep.subr.bf16.mxu0 0
        %677 = vmatpush1.bf16.msra.mxu0 0
        %678 = vmatprep.subr.bf16.mxu0 0
        %679 = vmatpush1.bf16.msra.mxu0 0
        %680 = vmatprep.subr.bf16.mxu0 0
        %681 = vmatpush1.bf16.msra.mxu0 0
        %682 = vmatprep.subr.bf16.mxu0 0
        %683 = vmatpush1.bf16.msra.mxu0 0
        %684 = vmatprep.subr.bf16.mxu0 0
        %685 = vmatpush1.bf16.msra.mxu0 0
        %686 = vmatprep.subr.bf16.mxu0 0
        %687 = vmatpush1.bf16.msra.mxu0 0
        %688 = vmatprep.mubr.bf16.mxu0 0
        %689 = vmatmul.mubr.bf16.gmra.mrb[0].mxu0 %v645
        %v690 = vpop.f32.mrb[0].mxu0
        %v691 = vadd.f32 %v587, %v690
        %v692 = vpop.f32.mrb[0].mxu0
        %v693 = vpop.f32.mrb[0].mxu0
        %v694 = vadd.f32 %v592, %v693
        %v695 = vpop.f32.mrb[0].mxu0
        %696 = vmatprep.mubr.bf16.mxu0 0
        %697 = vmatmul.mubr.bf16.gmra.mrb[0].mxu0 %v648
        %v698 = vpop.f32.mrb[0].mxu0
        %v699 = vadd.f32 %v597, %v698
        %v700 = vpop.f32.mrb[0].mxu0
        %v701 = vpop.f32.mrb[0].mxu0
        %v702 = vadd.f32 %v602, %v701
        %v703 = vpop.f32.mrb[0].mxu0
        %704 = vmatprep.mubr.bf16.mxu0 0
        %705 = vmatmul.mubr.bf16.gmra.mrb[0].mxu0 %v651
        %v706 = vpop.f32.mrb[0].mxu0
        %v707 = vadd.f32 %v607, %v706
        %v708 = vpop.f32.mrb[0].mxu0
        %v709 = vpop.f32.mrb[0].mxu0
        %v710 = vadd.f32 %v612, %v709
        %v711 = vpop.f32.mrb[0].mxu0
        %712 = vmatprep.mubr.bf16.mxu0 0
        %713 = vmatmul.mubr.bf16.gmra.mrb[0].mxu0 %v654
        %v714 = vpop.f32.mrb[0].mxu0
        %v715 = vadd.f32 %v617, %v714
        %v716 = vpop.f32.mrb[0].mxu0
        %v717 = vpop.f32.mrb[0].mxu0
        %v718 = vadd.f32 %v622, %v717
        %v719 = vpop.f32.mrb[0].mxu0
        %720 = vdwg.mxu0
        %vm721 = vcmp.gt.f32.partialorder %v691, 0.0
        %vm722 = vcmp.gt.f32.partialorder %v694, 0.0
        %vm723 = vcmp.gt.f32.partialorder %v699, 0.0
        %vm724 = vcmp.gt.f32.partialorder %v702, 0.0
        %vm725 = vcmp.gt.f32.partialorder %v707, 0.0
        %vm726 = vcmp.gt.f32.partialorder %v710, 0.0
        %vm727 = vcmp.gt.f32.partialorder %v715, 0.0
        %vm728 = vcmp.gt.f32.partialorder %v718, 0.0
        %v729 = vmul.f32 %v691, 0.01
        %v730 = vmul.f32 %v694, 0.01
        %v731 = vmul.f32 %v699, 0.01
        %v732 = vmul.f32 %v702, 0.01
        %v733 = vmul.f32 %v707, 0.01
        %v734 = vmul.f32 %v710, 0.01
        %v735 = vmul.f32 %v715, 0.01
        %v736 = vmul.f32 %v718, 0.01
        %v737 = vsel %vm721, %v691, %v729
        %v738 = vsel %vm722, %v694, %v730
        %v739 = vsel %vm723, %v699, %v731
        %v740 = vsel %vm724, %v702, %v732
        %v741 = vsel %vm725, %v707, %v733
        %v742 = vsel %vm726, %v710, %v734
        %v743 = vsel %vm727, %v715, %v735
        %v744 = vsel %vm728, %v718, %v736
        %v745 = vpack.c.bf16 %v738, %v737
        %v746 = vpack.c.bf16 %v740, %v739
        %v747 = vpack.c.bf16 %v742, %v741
        %v748 = vpack.c.bf16 %v744, %v743
        %750 = vset.pattern.permute.xlu0 0
        %751 = vperm.xlu0 %750, %v413
        %v752 = vpop.permute.xlu0 %751
        %755 = vset.pattern.permute.xlu0 0
        %756 = vperm.xlu0 %755, %v414
        %v757 = vpop.permute.xlu0 %756
        %v761 = vunpack.c.l.b16 %v411
        %v762 = vunpack.c.l.b16 %v412
        %v763 = vpack.c.b16 %v762, %v761
        %v765 = vsel %vm375, %v763, 0
        %767 = vmatprep.subr.bf16.mxu0 0
        %768 = vmatpush1.bf16.msra.mxu0 %v745
        %769 = vmatprep.subr.bf16.mxu0 0
        %770 = vmatpush1.bf16.msra.mxu0 %v746
        %771 = vmatprep.subr.bf16.mxu0 0
        %772 = vmatpush1.bf16.msra.mxu0 %v747
        %773 = vmatprep.subr.bf16.mxu0 0
        %774 = vmatpush1.bf16.msra.mxu0 %v748
        %775 = vmatprep.subr.bf16.mxu0 0
        %776 = vmatpush1.bf16.msra.mxu0 0
        %777 = vmatprep.subr.bf16.mxu0 0
        %778 = vmatpush1.bf16.msra.mxu0 0
        %779 = vmatprep.subr.bf16.mxu0 0
        %780 = vmatpush1.bf16.msra.mxu0 0
        %781 = vmatprep.subr.bf16.mxu0 0
        %782 = vmatpush1.bf16.msra.mxu0 0
        %783 = vmatprep.subr.bf16.mxu0 0
        %784 = vmatpush1.bf16.msra.mxu0 0
        %785 = vmatprep.subr.bf16.mxu0 0
        %786 = vmatpush1.bf16.msra.mxu0 0
        %787 = vmatprep.subr.bf16.mxu0 0
        %788 = vmatpush1.bf16.msra.mxu0 0
        %789 = vmatprep.subr.bf16.mxu0 0
        %790 = vmatpush1.bf16.msra.mxu0 0
        %791 = vmatprep.subr.bf16.mxu0 0
        %792 = vmatpush1.bf16.msra.mxu0 0
        %793 = vmatprep.subr.bf16.mxu0 0
        %794 = vmatpush1.bf16.msra.mxu0 0
        %795 = vmatprep.subr.bf16.mxu0 0
        %796 = vmatpush1.bf16.msra.mxu0 0
        %797 = vmatprep.subr.bf16.mxu0 0
        %798 = vmatpush1.bf16.msra.mxu0 0
        %799 = vmatprep.mubr.bf16.mxu0 0
        %800 = vmatmul.mubr.bf16.gmra.mrb[0].mxu0 %v765
        %v801 = vpop.f32.mrb[0].mxu0
        %v802 = vadd.f32 %v752, %v801
        %v803 = vpop.f32.mrb[0].mxu0
        %v804 = vpop.f32.mrb[0].mxu0
        %v805 = vadd.f32 %v757, %v804
        %v806 = vpop.f32.mrb[0].mxu0
        %807 = vdwg.mxu0
        %v808 = vsub.f32 1.0, %v802
        %v809 = vsub.f32 1.0, %v805
        %v810 = vld [vmem:[#allocation2] sm:$0xff]
        %v811 = vld [vmem:[#allocation2 + $0x8] sm:$0xff]
        %v812 = vmul.f32 %v808, %v808
        %v813 = vmul.f32 %v809, %v809
        %v814 = vadd.f32 %v810, %v812
        %v815 = vadd.f32 %v811, %v813
        %816 = vst.msk [vmem:[#allocation2] sm:$0xff] %vm375, %v814
        %817 = vst.msk [vmem:[#allocation2 + $0x8] sm:$0xff] %vm375, %v815
        %826 = vrot.lane.b32.xlu0 %v572, 64
        %v827 = vpop.permute.xlu0 %826
        %828 = vrot.lane.b32.xlu0 %v573, 64
        %v829 = vpop.permute.xlu0 %828
        %830 = vrot.lane.b32.xlu0 %v574, 64
        %v831 = vpop.permute.xlu0 %830
        %832 = vrot.lane.b32.xlu0 %v575, 64
        %v833 = vpop.permute.xlu0 %832
        %834 = vrot.lane.b32.xlu0 %v576, 64
        %v835 = vpop.permute.xlu0 %834
        %836 = vrot.lane.b32.xlu0 %v577, 64
        %v837 = vpop.permute.xlu0 %836
        %838 = vrot.lane.b32.xlu0 %v578, 64
        %v839 = vpop.permute.xlu0 %838
        %840 = vrot.lane.b32.xlu0 %v579, 64
        %v841 = vpop.permute.xlu0 %840
        %v850 = vsub.f32 %v572, %v827
        %v851 = vsub.f32 %v573, %v829
        %v852 = vsub.f32 %v574, %v831
        %v853 = vsub.f32 %v575, %v833
        %v854 = vsub.f32 %v576, %v835
        %v855 = vsub.f32 %v577, %v837
        %v856 = vsub.f32 %v578, %v839
        %v857 = vsub.f32 %v579, %v841
        %v858 = vand.u32 2147483647, %v850
        %v859 = vand.u32 2147483647, %v851
        %v860 = vand.u32 2147483647, %v852
        %v861 = vand.u32 2147483647, %v853
        %v862 = vand.u32 2147483647, %v854
        %v863 = vand.u32 2147483647, %v855
        %v864 = vand.u32 2147483647, %v856
        %v865 = vand.u32 2147483647, %v857
        %874 = vrot.lane.b32.xlu0 %v737, 64
        %v875 = vpop.permute.xlu0 %874
        %876 = vrot.lane.b32.xlu0 %v738, 64
        %v877 = vpop.permute.xlu0 %876
        %878 = vrot.lane.b32.xlu0 %v739, 64
        %v879 = vpop.permute.xlu0 %878
        %880 = vrot.lane.b32.xlu0 %v740, 64
        %v881 = vpop.permute.xlu0 %880
        %882 = vrot.lane.b32.xlu0 %v741, 64
        %v883 = vpop.permute.xlu0 %882
        %884 = vrot.lane.b32.xlu0 %v742, 64
        %v885 = vpop.permute.xlu0 %884
        %886 = vrot.lane.b32.xlu0 %v743, 64
        %v887 = vpop.permute.xlu0 %886
        %888 = vrot.lane.b32.xlu0 %v744, 64
        %v889 = vpop.permute.xlu0 %888
        %v898 = vsub.f32 %v737, %v875
        %v899 = vsub.f32 %v738, %v877
        %v900 = vsub.f32 %v739, %v879
        %v901 = vsub.f32 %v740, %v881
        %v902 = vsub.f32 %v741, %v883
        %v903 = vsub.f32 %v742, %v885
        %v904 = vsub.f32 %v743, %v887
        %v905 = vsub.f32 %v744, %v889
        %v906 = vand.u32 2147483647, %v898
        %v907 = vand.u32 2147483647, %v899
        %v908 = vand.u32 2147483647, %v900
        %v909 = vand.u32 2147483647, %v901
        %v910 = vand.u32 2147483647, %v902
        %v911 = vand.u32 2147483647, %v903
        %v912 = vand.u32 2147483647, %v904
        %v913 = vand.u32 2147483647, %v905
        %v914 = vadd.f32 %v858, %v906
        %v915 = vadd.f32 %v859, %v907
        %v916 = vadd.f32 %v860, %v908
        %v917 = vadd.f32 %v861, %v909
        %v918 = vadd.f32 %v862, %v910
        %v919 = vadd.f32 %v863, %v911
        %v920 = vadd.f32 %v864, %v912
        %v921 = vadd.f32 %v865, %v913
        %v922 = vld [vmem:[#allocation3] sm:$0xff]
        %v923 = vld [vmem:[#allocation3 + $0x8] sm:$0xff]
        %v924 = vld [vmem:[#allocation3 + $0x10] sm:$0xff]
        %v925 = vld [vmem:[#allocation3 + $0x18] sm:$0xff]
        %v926 = vld [vmem:[#allocation3 + $0x20] sm:$0xff]
        %v927 = vld [vmem:[#allocation3 + $0x28] sm:$0xff]
        %v928 = vld [vmem:[#allocation3 + $0x30] sm:$0xff]
        %v929 = vld [vmem:[#allocation3 + $0x38] sm:$0xff]
        %v930 = vadd.f32 %v922, %v914
        %v931 = vadd.f32 %v923, %v915
        %v932 = vadd.f32 %v924, %v916
        %v933 = vadd.f32 %v925, %v917
        %v934 = vadd.f32 %v926, %v918
        %v935 = vadd.f32 %v927, %v919
        %v936 = vadd.f32 %v928, %v920
        %v937 = vadd.f32 %v929, %v921
        %938 = vst.msk [vmem:[#allocation3] sm:$0xff] %vm375, %v930
        %939 = vst.msk [vmem:[#allocation3 + $0x8] sm:$0xff] %vm375, %v931
        %940 = vst.msk [vmem:[#allocation3 + $0x10] sm:$0xff] %vm375, %v932
        %941 = vst.msk [vmem:[#allocation3 + $0x18] sm:$0xff] %vm375, %v933
        %942 = vst.msk [vmem:[#allocation3 + $0x20] sm:$0xff] %vm375, %v934
        %943 = vst.msk [vmem:[#allocation3 + $0x28] sm:$0xff] %vm375, %v935
        %944 = vst.msk [vmem:[#allocation3 + $0x30] sm:$0xff] %vm375, %v936
        %945 = vst.msk [vmem:[#allocation3 + $0x38] sm:$0xff] %vm375, %v937
        // Predicated region
        $region57: #{tpu_custom_call.1} parent=51 // pred_check
          %p946 = pneg %p353
        $region58: #{tpu_custom_call.1} parent=51 // pred_check_branch
          %948 = sbr.rel (%p946) target = $region60
        $region59: #{tpu_custom_call.1} parent=51 // pred_region
          %v949 = vld [vmem:[#allocation2] sm:$0xff]
          %v950 = vld [vmem:[#allocation2 + $0x8] sm:$0xff]
          %v951 = vsel %vm375, %v949, 0.0
          %v952 = vsel %vm375, %v950, 0.0
          %v953 = vadd.f32 %v951, %v952
          %954 = vadd.xlane.f32.xlu0 %v953
          %v955 = vpop.xlane.xlu0 %954
          %v956 = vrot.slane %v955, 4
          %v957 = vadd.f32 %v955, %v956
          %v958 = vrot.slane %v957, 2
          %v959 = vadd.f32 %v957, %v958
          %v960 = vrot.slane %v959, 1
          %v961 = vadd.f32 %v959, %v960
          %s962 = vtos %v961
          %s963 = smul.f32 %s962, 0.0009765625
          %v964 = vld [vmem:[#allocation3] sm:$0xff]
          %v965 = vld [vmem:[#allocation3 + $0x8] sm:$0xff]
          %v966 = vld [vmem:[#allocation3 + $0x10] sm:$0xff]
          %v967 = vld [vmem:[#allocation3 + $0x18] sm:$0xff]
          %v968 = vld [vmem:[#allocation3 + $0x20] sm:$0xff]
          %v969 = vld [vmem:[#allocation3 + $0x28] sm:$0xff]
          %v970 = vld [vmem:[#allocation3 + $0x30] sm:$0xff]
          %v971 = vld [vmem:[#allocation3 + $0x38] sm:$0xff]
          %v972 = vsel %vm375, %v964, 0.0
          %v973 = vsel %vm375, %v965, 0.0
          %v974 = vadd.f32 %v972, %v973
          %v975 = vsel %vm375, %v966, 0.0
          %v976 = vadd.f32 %v974, %v975
          %v977 = vsel %vm375, %v967, 0.0
          %v978 = vadd.f32 %v976, %v977
          %v979 = vsel %vm375, %v968, 0.0
          %v980 = vadd.f32 %v978, %v979
          %v981 = vsel %vm375, %v969, 0.0
          %v982 = vadd.f32 %v980, %v981
          %v983 = vsel %vm375, %v970, 0.0
          %v984 = vadd.f32 %v982, %v983
          %v985 = vsel %vm375, %v971, 0.0
          %v986 = vadd.f32 %v984, %v985
          %987 = vadd.xlane.f32.xlu0 %v986
          %v988 = vpop.xlane.xlu0 %987
          %v989 = vrot.slane %v988, 4
          %v990 = vadd.f32 %v988, %v989
          %v991 = vrot.slane %v990, 2
          %v992 = vadd.f32 %v990, %v991
          %v993 = vrot.slane %v992, 1
          %v994 = vadd.f32 %v992, %v993
          %s995 = vtos %v994
          %s996 = smul.f32 %s995, 0.00024414063
          %s997 = sadd.f32 %s963, %s996
          %v998 = vstv %s997
          %999 = vst [vmem:[%s337] sm:$0xff] %v998
        $region60: #{tpu_custom_call.1} parent=51 // pred_fallthru
          _
        %s1000 = sand.u32 %s224, 1
        %s1001 = scalar_lea.sflag [#allocation5], %s1000
        %s1002 = sand.u32 %s224, 1
        %s1003 = smul.addr %s1002, 8
        %s1004 = scalar_lea.vmem [#allocation4], %s1003
        // Predicated region
        $region61: #{tpu_custom_call.1} parent=51 // pred_check
          %p1005 = pneg %p234
        $region62: #{tpu_custom_call.1} parent=51 // pred_check_branch
          %1007 = sbr.rel (%p1005) target = $region64
        $region63: #{tpu_custom_call.1} parent=51 // pred_region
          %s1009 = ssub.s32 128, 128
          %1010 = vsyncadd %s1001, %s1009
          %s1011 = smul.addr %s26, 128
          %s1012 = scalar_lea.hbm %s8, %s1011
          %s1014 = sshll.u32 %s1004, 4
          %s1015 = int_to_ptr.vmem [resolvable:$true] %s1014
          %1017 = dma.vmem_to_hbm [thread:$0]  %s1015, 128, %s1012, %s1001
        $region64: #{tpu_custom_call.1} parent=51 // pred_fallthru
          _
      $region52: #{tpu_custom_call.1} parent=5 // pred_fallthru
        _
      %p1018 = scmp.le.s32.totalorder 2, %s17
      // Predicated region
      $region65: #{tpu_custom_call.1} parent=5 // pred_check
        %p1019 = pneg %p1018
      $region66: #{tpu_custom_call.1} parent=5 // pred_check_branch
        %1021 = sbr.rel (%p1019) target = $region68
      $region67: #{tpu_custom_call.1} parent=5 // pred_region
        %s1022 = ssub.s32 %s17, 2
        // Predicated region
        $region69: #{tpu_custom_call.1} parent=67 // pred_check
          %p1023 = pneg %p240
        $region70: #{tpu_custom_call.1} parent=67 // pred_check_branch
          %1025 = sbr.rel (%p1023) target = $region72
        $region71: #{tpu_custom_call.1} parent=67 // pred_region
          %s1026 = sand.u32 %s225, 1
          %s1027 = scalar_lea.sflag [#allocation5], %s1026
          %s1028 = sand.u32 %s225, 1
          %s1029 = smul.addr %s1028, 8
          %s1030 = scalar_lea.vmem [#allocation4], %s1029
          %1031 = dma.done %s1027, 128
        $region72: #{tpu_custom_call.1} parent=67 // pred_fallthru
          _
      $region68: #{tpu_custom_call.1} parent=5 // pred_fallthru
        _
    $region6: #{tpu_custom_call.1} parent=1 // loop_footer
      %s21 = sadd.s32 1, %s17
    $region7: #{tpu_custom_call.1} parent=1 // loop_footer_branch
      %16 = sbr.rel target = $region3
    $region8: #{tpu_custom_call.1} parent=1 // loop_exit
      _
    %1032 = vsyncpa [#allocation5], 1
    %s1033 = scalar_lea.sflag [#allocation5], 1
    %1034 = vsyncpa %s1033, 1

</llo_original>
